<compile_context>
chip_gen: v7x
topology: tpu7x:2x2x1
jax: 0.10.0
libtpu: 0.0.40
codegen_flags: <defaults>
</compile_context>

<pallas_src>
import functools

import jax
import jax.numpy as jnp
from jax.experimental import pallas as pl
from jax.experimental.pallas import tpu as pltpu


# ----------------------------------------------------------------------------
# Helpers
# ----------------------------------------------------------------------------

def _round_up(x, m):
    return ((x + m - 1) // m) * m


_TM_MAX = 512  # per review: bigger tiles push toward HBM roofline on v5e/v6e;
               # footprint stays well under v7x's 32 MiB scoped VMEM.


def _pick_tm(mp):
    """Largest M tile <= 512 that divides mp (multiple of 8); else 512 + pad."""
    if mp <= _TM_MAX:
        return mp
    for t in range(_TM_MAX, 127, -8):
        if mp % t == 0:
            return t
    return _TM_MAX  # rare fallback; caller pads M up to a multiple of this.


# ----------------------------------------------------------------------------
# Pallas kernels
# ----------------------------------------------------------------------------

def _mm_kernel(a_ref, w_ref, b_ref, o_ref, *, relu):
    # Whole K resident: single MXU matmul per (i, j) block, f32 accumulation
    # inside the dot; bias + activation fused into the store.
    out = jnp.dot(a_ref[...], w_ref[...], preferred_element_type=jnp.float32)
    out = out + b_ref[...]
    if relu:
        out = jnp.maximum(out, 0.0)
    o_ref[...] = out.astype(o_ref.dtype)


def _mm_res_kernel(a_ref, w_ref, b_ref, r_ref, o_ref, *, relu):
    out = jnp.dot(a_ref[...], w_ref[...], preferred_element_type=jnp.float32)
    out = out + b_ref[...] + r_ref[...].astype(jnp.float32)
    if relu:
        out = jnp.maximum(out, 0.0)
    o_ref[...] = out.astype(o_ref.dtype)


def _gem_kernel(x_ref, o_ref, acc_ref, *, p, eps, inv_hw, hw, needs_mask,
                use_sublane):
    # x_ref: (B, t_hw, C) bf16; running sum of clamp(x, eps)^p over the HW grid.
    i = pl.program_id(0)

    @pl.when(i == 0)
    def _():
        acc_ref[...] = jnp.zeros_like(acc_ref)

    b, t, c = x_ref.shape
    x = jnp.maximum(x_ref[...].astype(jnp.float32), eps)
    if p == 3.0:
        xp = x * x * x                       # VPU only; EUP slot stays free
    else:
        xp = jnp.exp(jnp.log(x) * p)         # x >= eps > 0

    if needs_mask:                           # ragged last spatial block
        pos = i * t + jax.lax.broadcasted_iota(jnp.int32, (1, t, 1), 1)
        xp = jnp.where(pos < hw, xp, 0.0)

    if use_sublane:
        # Keep 8 sublane partial sums per step (pure VALU adds); the
        # cross-sublane XLU reduce happens only once, in the finalize.
        acc_ref[...] += jnp.sum(xp.reshape(b, t // 8, 8, c), axis=1)
    else:
        acc_ref[...] += jnp.sum(xp, axis=1, keepdims=True)

    @pl.when(i == pl.num_programs(0) - 1)
    def _():
        s = jnp.sum(acc_ref[...], axis=1) * inv_hw      # spatial mean, (B, C)
        o_ref[...] = jnp.exp(jnp.log(s) * (1.0 / p))    # tiny final root only


# ----------------------------------------------------------------------------
# Fused matmul wrapper (whole-K-resident, bf16 MXU, f32 accumulate in the dot)
# ----------------------------------------------------------------------------

def matmul_fused(a, w, bias, residual=None, relu=False, out_dtype=jnp.bfloat16):
    """out = act(a @ w + bias [+ residual]); a:(M,K) w:(K,N) bias:(N,)."""
    M, K = a.shape
    N = w.shape[1]

    a = a.astype(jnp.bfloat16)
    w = w.astype(jnp.bfloat16)
    bias = bias.astype(jnp.float32).reshape(1, N)

    # Whole K resident (K <= 2304 for every conv of this net): no K grid axis,
    # no accumulator scratch, and K is never padded (full-dim blocks).
    mp = _round_up(M, 8)
    tm = _pick_tm(mp)
    if mp % tm != 0:                 # rare fallback only (never hit in this net)
        mp = _round_up(mp, tm)
    if mp != M:
        a = jnp.pad(a, ((0, mp - M), (0, 0)))

    # Lane-dense (>=128) output tiles whenever N is a multiple of 128; otherwise
    # keep N unpadded (full-dim block) to avoid padding the weight / residual /
    # output and the extra HBM slice pass.
    if N % 256 == 0:
        tn = 256
    elif N % 128 == 0:
        tn = 128
    else:
        tn = N

    grid = (mp // tm, N // tn)

    in_specs = [
        pl.BlockSpec((tm, K), lambda i, j: (i, 0)),
        pl.BlockSpec((K, tn), lambda i, j: (0, j)),
        pl.BlockSpec((1, tn), lambda i, j: (0, j)),
    ]
    inputs = [a, w, bias]
    if residual is not None:
        r = residual.astype(jnp.bfloat16)
        if mp != M:
            r = jnp.pad(r, ((0, mp - M), (0, 0)))
        in_specs.append(pl.BlockSpec((tm, tn), lambda i, j: (i, j)))
        inputs.append(r)
        kernel = functools.partial(_mm_res_kernel, relu=relu)
    else:
        kernel = functools.partial(_mm_kernel, relu=relu)

    out = pl.pallas_call(
        kernel,
        out_shape=jax.ShapeDtypeStruct((mp, N), out_dtype),
        grid=grid,
        in_specs=in_specs,
        out_specs=pl.BlockSpec((tm, tn), lambda i, j: (i, j)),
        compiler_params=pltpu.CompilerParams(
            dimension_semantics=("parallel", "parallel"),
            vmem_limit_bytes=32 * 1024 * 1024,  # explicit: v5e default is 16 MiB
        ),
    )(*inputs)
    return out if mp == M else out[:M]


# ----------------------------------------------------------------------------
# GeM pooling (NHWC in, (B, C) out)
# ----------------------------------------------------------------------------

def gem_pool(x_nhwc, p=3.0, eps=1e-6):
    B, H, W, C = x_nhwc.shape
    HW = H * W
    x = x_nhwc.reshape(B, HW, C)

    # Pad/mask-tolerant spatial tile: never falls back to a whole-tensor block
    # for large HW (latent VMEM risk on v7x), and the ragged tail is masked.
    t_hw = HW if HW <= 512 else 512
    needs_mask = (HW % t_hw) != 0
    use_sublane = (t_hw % 8) == 0
    acc_rows = 8 if use_sublane else 1
    grid = (pl.cdiv(HW, t_hw),)

    kernel = functools.partial(
        _gem_kernel, p=float(p), eps=float(eps), inv_hw=1.0 / HW, hw=HW,
        needs_mask=needs_mask, use_sublane=use_sublane)
    return pl.pallas_call(
        kernel,
        out_shape=jax.ShapeDtypeStruct((B, C), jnp.float32),
        grid=grid,
        in_specs=[pl.BlockSpec((B, t_hw, C), lambda i: (0, i, 0))],
        out_specs=pl.BlockSpec((B, C), lambda i: (0, 0)),
        scratch_shapes=[pltpu.VMEM((B, acc_rows, C), jnp.float32)],
        compiler_params=pltpu.CompilerParams(
            dimension_semantics=("arbitrary",),
            vmem_limit_bytes=32 * 1024 * 1024,
        ),
    )(x)


# ----------------------------------------------------------------------------
# Conv (im2col + Pallas matmul) and resnet18 trunk -- all NHWC
# ----------------------------------------------------------------------------

def conv2d_pallas(x_nhwc, w_oihw, bias, stride, padding, relu=False,
                  residual=None, out_dtype=jnp.bfloat16):
    """x: NHWC, w: (Cout, Cin, kh, kw), bias: (Cout,). Returns NHWC."""
    B, H, W, Cin = x_nhwc.shape
    Cout, _, kh, kw = w_oihw.shape

    if kh == 1 and kw == 1:
        # 1x1 conv: no patch extraction, just (optional) strided subsample.
        # TODO(synk): fold the stride-2 subsample into the A-side BlockSpec to
        #   avoid the small strided XLA copy.
        xs = x_nhwc[:, ::stride, ::stride, :] if stride > 1 else x_nhwc
        OH, OW = xs.shape[1], xs.shape[2]
        a = xs.reshape(B * OH * OW, Cin)
        wmat = w_oihw.reshape(Cout, Cin).T
    else:
        # TODO(synk): im2col materializes kh*kw x activation traffic in HBM;
        #   shifted-view tap folding would remove it (see header).
        patches = jax.lax.conv_general_dilated_patches(
            x_nhwc.astype(jnp.bfloat16), (kh, kw), (stride, stride),
            ((padding, padding), (padding, padding)),
            dimension_numbers=("NHWC", "HWIO", "NHWC"))
        _, OH, OW, CKK = patches.shape
        a = patches.reshape(B * OH * OW, CKK)
        # patches features are (Cin, kh, kw)-major -> matches OIHW flattening.
        wmat = w_oihw.reshape(Cout, Cin * kh * kw).T

    r = None
    if residual is not None:
        r = residual.reshape(B * OH * OW, Cout)

    out = matmul_fused(a, wmat, bias, residual=r, relu=relu, out_dtype=out_dtype)
    return out.reshape(B, OH, OW, Cout)


def maxpool_3x3_s2(x_nhwc):
    # Glue: torchvision resnet maxpool (kernel 3, stride 2, padding 1), NHWC.
    return jax.lax.reduce_window(
        x_nhwc, jnp.array(-jnp.inf, x_nhwc.dtype), jax.lax.max,
        window_dimensions=(1, 3, 3, 1),
        window_strides=(1, 2, 2, 1),
        padding=((0, 0), (1, 1), (1, 1), (0, 0)))


def conv_bn_act(x, p, stride, padding, relu=True, residual=None):
    """Conv + (folded, eval-mode) BatchNorm + optional residual + optional ReLU."""
    scale = p["gamma"] / jnp.sqrt(p["var"] + 1e-5)
    w = p["w"] * scale[:, None, None, None]
    b = p["beta"] - p["mean"] * scale
    return conv2d_pallas(x, w, b, stride, padding, relu=relu, residual=residual)


def basic_block(x, p, stride):
    identity = x
    out = conv_bn_act(x, p["conv1"], stride, 1, relu=True)
    if "down" in p:
        identity = conv_bn_act(x, p["down"], stride, 0, relu=False)
    # second conv: BN + residual add + ReLU all fused in the matmul store.
    out = conv_bn_act(out, p["conv2"], 1, 1, relu=True, residual=identity)
    return out


def forward_resnet(x, params):
    x = conv_bn_act(x, params["conv1"], stride=2, padding=3, relu=True)
    x = maxpool_3x3_s2(x)
    for blk in params["layer1"]:
        x = basic_block(x, blk, stride=1)
    x = basic_block(x, params["layer2"][0], stride=2)
    x = basic_block(x, params["layer2"][1], stride=1)
    x = basic_block(x, params["layer3"][0], stride=2)
    x = basic_block(x, params["layer3"][1], stride=1)
    return x  # NHWC (B, H/16, W/16, 256)


def general_image_fe_forward(params, data_dict):
    """Mirrors GeneralImageFE.forward for image_fe='resnet18', input_type='image'."""
    x = data_dict["images"]                                   # NCHW (PyTorch layout)
    x = jnp.transpose(x, (0, 2, 3, 1)).astype(jnp.bfloat16)   # NHWC, once
    x = forward_resnet(x, params)                             # NHWC bf16
    x_feat_nhwc = x
    x_gem_256 = gem_pool(x_feat_nhwc)                         # (B, 256)
    y = conv2d_pallas(x_feat_nhwc, params["conv1x1_w"], params["conv1x1_b"],
                      stride=1, padding=0, relu=False)        # NHWC (B, h, w, fe_dim)
    x_gem = gem_pool(y)                                       # (B, image_fe_dim)
    # Back to NCHW f32 only at the module boundary (PyTorch semantics).
    x_out = jnp.transpose(y, (0, 3, 1, 2)).astype(jnp.float32)
    x_feat_256 = jnp.transpose(x_feat_nhwc, (0, 3, 1, 2)).astype(jnp.float32)
    return x_out, x_gem, x_feat_256, x_gem_256


# ----------------------------------------------------------------------------
# Deterministic parameter init (synthetic weights, resnet18 shapes)
# ----------------------------------------------------------------------------

def init_conv_bn(key, cout, cin, k):
    kw_, kg, kb, km, kv = jax.random.split(key, 5)
    return dict(
        w=0.05 * jax.random.normal(kw_, (cout, cin, k, k), jnp.float32),
        gamma=1.0 + 0.1 * jax.random.normal(kg, (cout,), jnp.float32),
        beta=0.1 * jax.random.normal(kb, (cout,), jnp.float32),
        mean=0.05 * jax.random.normal(km, (cout,), jnp.float32),
        var=1.0 + 0.1 * jnp.abs(jax.random.normal(kv, (cout,), jnp.float32)),
    )


def init_block(key, cin, cout, downsample):
    k1, k2, k3 = jax.random.split(key, 3)
    p = {"conv1": init_conv_bn(k1, cout, cin, 3),
         "conv2": init_conv_bn(k2, cout, cout, 3)}
    if downsample:
        p["down"] = init_conv_bn(k3, cout, cin, 1)
    return p


def init_params(key, image_fe_dim=32):
    ks = jax.random.split(key, 9)
    params = {
        "conv1": init_conv_bn(ks[0], 64, 3, 7),
        "layer1": [init_block(ks[1], 64, 64, False),
                   init_block(ks[2], 64, 64, False)],
        "layer2": [init_block(ks[3], 64, 128, True),
                   init_block(ks[4], 128, 128, False)],
        "layer3": [init_block(ks[5], 128, 256, True),
                   init_block(ks[6], 256, 256, False)],
        # self.conv1x1 = nn.Conv2d(last_dim=256, image_fe_dim, kernel_size=1)
        "conv1x1_w": 0.05 * jax.random.normal(ks[7], (image_fe_dim, 256, 1, 1),
                                              jnp.float32),
        "conv1x1_b": 0.05 * jax.random.normal(ks[8], (image_fe_dim,), jnp.float32),
    }
    return params


# ----------------------------------------------------------------------------
# Reference checks (one-off, as requested by the review) + demo
# ----------------------------------------------------------------------------

def _conv_reference(x_nhwc, w_oihw, bias, stride, padding):
    w_hwio = jnp.transpose(w_oihw, (2, 3, 1, 0)).astype(jnp.bfloat16)
    out = jax.lax.conv_general_dilated(
        x_nhwc.astype(jnp.bfloat16), w_hwio, (stride, stride),
        ((padding, padding), (padding, padding)),
        dimension_numbers=("NHWC", "HWIO", "NHWC"),
        preferred_element_type=jnp.float32)
    return out + bias.astype(jnp.float32)


def _run_reference_checks(key):
    k1, k2, k3, k4 = jax.random.split(key, 4)
    # 3x3 stride-1 conv (im2col feature-ordering check).
    x = jax.random.normal(k1, (2, 16, 16, 16), jnp.float32).astype(jnp.bfloat16)
    w = 0.05 * jax.random.normal(k2, (32, 16, 3, 3), jnp.float32)
    b = 0.05 * jax.random.normal(k3, (32,), jnp.float32)
    got = conv2d_pallas(x, w, b, stride=1, padding=1, out_dtype=jnp.float32)
    ref = _conv_reference(x, w, b, stride=1, padding=1)
    assert bool(jnp.allclose(got, ref, atol=2e-2, rtol=2e-2)), "3x3 conv mismatch"
    # 7x7 stride-2 stem-style conv.
    xs = jax.random.normal(k4, (2, 16, 16, 3), jnp.float32).astype(jnp.bfloat16)
    w7 = 0.05 * jax.random.normal(k2, (64, 3, 7, 7), jnp.float32)
    b7 = 0.05 * jax.random.normal(k3, (64,), jnp.float32)
    got7 = conv2d_pallas(xs, w7, b7, stride=2, padding=3, out_dtype=jnp.float32)
    ref7 = _conv_reference(xs, w7, b7, stride=2, padding=3)
    assert bool(jnp.allclose(got7, ref7, atol=2e-2, rtol=2e-2)), "7x7 conv mismatch"
    # GeM pooling.
    feat = jnp.abs(jax.random.normal(k1, (2, 4, 4, 256), jnp.float32)).astype(jnp.bfloat16)
    got_g = gem_pool(feat)
    xf = jnp.maximum(feat.astype(jnp.float32), 1e-6)
    ref_g = jnp.mean(xf ** 3.0, axis=(1, 2)) ** (1.0 / 3.0)
    assert bool(jnp.allclose(got_g, ref_g, atol=1e-2, rtol=1e-2)), "GeM mismatch"


if __name__ == "__main__":
    key = jax.random.PRNGKey(0)
    kp, kx, kc = jax.random.split(key, 3)

    _run_reference_checks(kc)

    image_fe_dim = 32
    params = init_params(kp, image_fe_dim=image_fe_dim)

    # small NCHW image batch: (B=2, C=3, H=32, W=32)
    images = jax.random.normal(kx, (2, 3, 32, 32), jnp.float32)
    data_dict = {"images": images}

    fwd = jax.jit(general_image_fe_forward)
    x, x_gem, x_feat_256, x_gem_256 = jax.block_until_ready(
        fwd(params, data_dict))

    assert x.shape == (2, image_fe_dim, 2, 2)
    assert x_gem.shape == (2, image_fe_dim)
    assert x_feat_256.shape == (2, 256, 2, 2)
    assert x_gem_256.shape == (2, 256)
    assert bool(jnp.all(jnp.isfinite(x_gem))) and bool(jnp.all(jnp.isfinite(x_gem_256)))
    assert bool(jnp.all(jnp.isfinite(x))) and bool(jnp.all(jnp.isfinite(x_feat_256)))
    print("KERNEL_OK")
</pallas_src>

<mosaic_0001>
module attributes {stable_mosaic.version = 11 : i64} {
  func.func @_mm_kernel(%arg0: i32, %arg1: i32, %arg2: memref<512x144xbf16, #tpu.memory_space<vmem>>, %arg3: memref<144x32xbf16, #tpu.memory_space<vmem>>, %arg4: memref<1x32xf32, #tpu.memory_space<vmem>>, %arg5: memref<512x32xf32, #tpu.memory_space<vmem>>) attributes {dimension_semantics = [#tpu.dimension_semantics<parallel>, #tpu.dimension_semantics<parallel>], iteration_bounds = array<i64: 1, 1>, scalar_prefetch = 0 : i64, scratch_operands = 0 : i64, tpu.core_type = #tpu.core_type<tc>, window_params = [{transform_indices = @transform_0, window_bounds = array<i64: 512, 144>}, {transform_indices = @transform_1, window_bounds = array<i64: 144, 32>}, {transform_indices = @transform_2, window_bounds = array<i64: 1, 32>}, {transform_indices = @transform_3, window_bounds = array<i64: 512, 32>}]} {
    %c0 = arith.constant 0 : index
    %c0_0 = arith.constant 0 : index
    %0 = vector.load %arg2[%c0, %c0_0] : memref<512x144xbf16, #tpu.memory_space<vmem>>, vector<512x144xbf16>
    %c0_1 = arith.constant 0 : index
    %c0_2 = arith.constant 0 : index
    %1 = vector.load %arg3[%c0_1, %c0_2] : memref<144x32xbf16, #tpu.memory_space<vmem>>, vector<144x32xbf16>
    %cst = arith.constant dense<0.000000e+00> : vector<512x32xf32>
    %2 = tpu.matmul %0, %1, %cst {dimension_numbers = #tpu.dot_dimension_numbers<[1], [0], [0], [1], [0, 0, 1, 1], [], []>} : vector<512x144xbf16>, vector<144x32xbf16>, vector<512x32xf32> -> vector<512x32xf32>
    %c0_3 = arith.constant 0 : index
    %c0_4 = arith.constant 0 : index
    %3 = vector.load %arg4[%c0_3, %c0_4] : memref<1x32xf32, #tpu.memory_space<vmem>>, vector<1x32xf32>
    %4 = vector.broadcast %3 : vector<1x32xf32> to vector<512x32xf32>
    %5 = arith.addf %2, %4 : vector<512x32xf32>
    %c0_5 = arith.constant 0 : index
    %c0_6 = arith.constant 0 : index
    %6 = vector.load %arg5[%c0_5, %c0_6] : memref<512x32xf32, #tpu.memory_space<vmem>>, vector<512x32xf32>
    tpu.vector_store %arg5[%c0_5, %c0_6], %5 {strides = array<i32>} : memref<512x32xf32, #tpu.memory_space<vmem>>, vector<512x32xf32>,
    return
  }
  func.func @transform_0(%arg0: i32, %arg1: i32) -> (i32, i32) {
    %c0_i32 = arith.constant 0 : i32
    %c0_i32_0 = arith.constant 0 : i32
    return %arg0, %c0_i32 : i32, i32
  }
  func.func @transform_1(%arg0: i32, %arg1: i32) -> (i32, i32) {
    %c0_i32 = arith.constant 0 : i32
    %c0_i32_0 = arith.constant 0 : i32
    return %c0_i32, %arg1 : i32, i32
  }
  func.func @transform_2(%arg0: i32, %arg1: i32) -> (i32, i32) {
    %c0_i32 = arith.constant 0 : i32
    %c0_i32_0 = arith.constant 0 : i32
    return %c0_i32, %arg1 : i32, i32
  }
  func.func @transform_3(%arg0: i32, %arg1: i32) -> (i32, i32) {
    %c0_i32 = arith.constant 0 : i32
    return %arg0, %arg1 : i32, i32
  }
}

</mosaic_0001>

<llo_original>
// kernel: tpu_custom_call.1
$region0: #{tpu_custom_call.1}
  #allocation0 [shape = 'u32[]', space=smem, size = 0x4, offset = 0x4, fixed_abs, tag = 'smem constant byte address 0x4 - core index']
  #allocation1 [shape = 'u32[144,128]{1,0:T(1,128)}', space=vmem, size = 0x12000, scoped, tag = 'internal scratch']
  %s0 = inlined_call_operand.vmem [shape: bf16[512,144], index: 0, kind: input, shape index: {}]
  %s1 = inlined_call_operand.vmem [shape: bf16[144,32], index: 1, kind: input, shape index: {}]
  %s2 = inlined_call_operand.vmem [shape: f32[1,32], index: 2, kind: input, shape index: {}]
  %s3 = inlined_call_operand.vmem [shape: f32[512,32], index: 3, kind: output, shape index: {}]
  %s4 = sld [smem:[#allocation0]]
  $region22: #{tpu_custom_call.1} parent=0
    _
  %s6 = ssub.s32 1, %s4
  %s7 = scalar_select 0, %s6, %s4
  // Predicated region
  $region2: #{tpu_custom_call.1} parent=0 // pred_check
    _
  $region3: #{tpu_custom_call.1} parent=0 // pred_check_branch
    %9 = sbr.rel (0) target = $region5
  $region4: #{tpu_custom_call.1} parent=0 // pred_region
    _
  $region5: #{tpu_custom_call.1} parent=0 // pred_fallthru
    _
  // Predicated region
  $region6: #{tpu_custom_call.1} parent=0 // pred_check
    _
  $region7: #{tpu_custom_call.1} parent=0 // pred_check_branch
    %11 = sbr.rel (0) target = $region9
  $region8: #{tpu_custom_call.1} parent=0 // pred_region
    _
  $region9: #{tpu_custom_call.1} parent=0 // pred_fallthru
    _
  // Predicated region
  $region10: #{tpu_custom_call.1} parent=0 // pred_check
    _
  $region11: #{tpu_custom_call.1} parent=0 // pred_check_branch
    %13 = sbr.rel (0) target = $region13
  $region12: #{tpu_custom_call.1} parent=0 // pred_region
    _
  $region13: #{tpu_custom_call.1} parent=0 // pred_fallthru
    _
  %v15 = vld [vmem:[%s0] sm:$0xff]
  %v16 = vld [vmem:[%s0 + $0x8] sm:$0xff]
  %v17 = vld [vmem:[%s0 + $0x10] sm:$0xff]
  %v18 = vld [vmem:[%s0 + $0x18] sm:$0xff]
  %v19 = vld [vmem:[%s0 + $0x20] sm:$0xff]
  %v20 = vld [vmem:[%s0 + $0x28] sm:$0xff]
  %v21 = vld [vmem:[%s0 + $0x30] sm:$0xff]
  %v22 = vld [vmem:[%s0 + $0x38] sm:$0xff]
  %v23 = vld [vmem:[%s0 + $0x40] sm:$0xff]
  %v24 = vld [vmem:[%s0 + $0x48] sm:$0xff]
  %v25 = vld [vmem:[%s0 + $0x50] sm:$0xff]
  %v26 = vld [vmem:[%s0 + $0x58] sm:$0xff]
  %v27 = vld [vmem:[%s0 + $0x60] sm:$0xff]
  %v28 = vld [vmem:[%s0 + $0x68] sm:$0xff]
  %v29 = vld [vmem:[%s0 + $0x70] sm:$0xff]
  %v30 = vld [vmem:[%s0 + $0x78] sm:$0xff]
  %v31 = vld [vmem:[%s0 + $0x80] sm:$0xff]
  %v32 = vld [vmem:[%s0 + $0x88] sm:$0xff]
  %v33 = vld [vmem:[%s0 + $0x90] sm:$0xff]
  %v34 = vld [vmem:[%s0 + $0x98] sm:$0xff]
  %v35 = vld [vmem:[%s0 + $0xa0] sm:$0xff]
  %v36 = vld [vmem:[%s0 + $0xa8] sm:$0xff]
  %v37 = vld [vmem:[%s0 + $0xb0] sm:$0xff]
  %v38 = vld [vmem:[%s0 + $0xb8] sm:$0xff]
  %v39 = vld [vmem:[%s0 + $0xc0] sm:$0xff]
  %v40 = vld [vmem:[%s0 + $0xc8] sm:$0xff]
  %v41 = vld [vmem:[%s0 + $0xd0] sm:$0xff]
  %v42 = vld [vmem:[%s0 + $0xd8] sm:$0xff]
  %v43 = vld [vmem:[%s0 + $0xe0] sm:$0xff]
  %v44 = vld [vmem:[%s0 + $0xe8] sm:$0xff]
  %v45 = vld [vmem:[%s0 + $0xf0] sm:$0xff]
  %v46 = vld [vmem:[%s0 + $0xf8] sm:$0xff]
  %v47 = vld [vmem:[%s0 + $0x100] sm:$0xff]
  %v48 = vld [vmem:[%s0 + $0x108] sm:$0xff]
  %v49 = vld [vmem:[%s0 + $0x110] sm:$0xff]
  %v50 = vld [vmem:[%s0 + $0x118] sm:$0xff]
  %v51 = vld [vmem:[%s0 + $0x120] sm:$0xff]
  %v52 = vld [vmem:[%s0 + $0x128] sm:$0xff]
  %v53 = vld [vmem:[%s0 + $0x130] sm:$0xff]
  %v54 = vld [vmem:[%s0 + $0x138] sm:$0xff]
  %v55 = vld [vmem:[%s0 + $0x140] sm:$0xff]
  %v56 = vld [vmem:[%s0 + $0x148] sm:$0xff]
  %v57 = vld [vmem:[%s0 + $0x150] sm:$0xff]
  %v58 = vld [vmem:[%s0 + $0x158] sm:$0xff]
  %v59 = vld [vmem:[%s0 + $0x160] sm:$0xff]
  %v60 = vld [vmem:[%s0 + $0x168] sm:$0xff]
  %v61 = vld [vmem:[%s0 + $0x170] sm:$0xff]
  %v62 = vld [vmem:[%s0 + $0x178] sm:$0xff]
  %v63 = vld [vmem:[%s0 + $0x180] sm:$0xff]
  %v64 = vld [vmem:[%s0 + $0x188] sm:$0xff]
  %v65 = vld [vmem:[%s0 + $0x190] sm:$0xff]
  %v66 = vld [vmem:[%s0 + $0x198] sm:$0xff]
  %v67 = vld [vmem:[%s0 + $0x1a0] sm:$0xff]
  %v68 = vld [vmem:[%s0 + $0x1a8] sm:$0xff]
  %v69 = vld [vmem:[%s0 + $0x1b0] sm:$0xff]
  %v70 = vld [vmem:[%s0 + $0x1b8] sm:$0xff]
  %v71 = vld [vmem:[%s0 + $0x1c0] sm:$0xff]
  %v72 = vld [vmem:[%s0 + $0x1c8] sm:$0xff]
  %v73 = vld [vmem:[%s0 + $0x1d0] sm:$0xff]
  %v74 = vld [vmem:[%s0 + $0x1d8] sm:$0xff]
  %v75 = vld [vmem:[%s0 + $0x1e0] sm:$0xff]
  %v76 = vld [vmem:[%s0 + $0x1e8] sm:$0xff]
  %v77 = vld [vmem:[%s0 + $0x1f0] sm:$0xff]
  %v78 = vld [vmem:[%s0 + $0x1f8] sm:$0xff]
  %v79 = vld [vmem:[%s1] sm:$0xf]
  %v80 = vld [vmem:[%s1 + $0x4] sm:$0xf]
  %v81 = vld [vmem:[%s1 + $0x8] sm:$0xf]
  %v82 = vld [vmem:[%s1 + $0xc] sm:$0xf]
  %v83 = vld [vmem:[%s1 + $0x10] sm:$0xf]
  %v84 = vld [vmem:[%s1 + $0x14] sm:$0xf]
  %v85 = vld [vmem:[%s1 + $0x18] sm:$0xf]
  %v86 = vld [vmem:[%s1 + $0x1c] sm:$0xf]
  %v87 = vld [vmem:[%s1 + $0x20] sm:$0xf]
  %v88 = vld [vmem:[%s1 + $0x24] sm:$0xf]
  %v89 = vld [vmem:[%s1 + $0x28] sm:$0xf]
  %v90 = vld [vmem:[%s1 + $0x2c] sm:$0xf]
  %v91 = vld [vmem:[%s1 + $0x30] sm:$0xf]
  %v92 = vld [vmem:[%s1 + $0x34] sm:$0xf]
  %v93 = vld [vmem:[%s1 + $0x38] sm:$0xf]
  %v94 = vld [vmem:[%s1 + $0x3c] sm:$0xf]
  %v95 = vld [vmem:[%s1 + $0x40] sm:$0xf]
  %v96 = vld [vmem:[%s1 + $0x44] sm:$0xf]
  %v97 = vld [vmem:[%s2] sm:$0x1]
  %v99 = vlaneseq
  %v100 = vshrl.u32 %v99, 7
  %v101 = vsub.s32 0, %v100
  %v102 = vrot.slane %v97, %v101
  %v168 = vunpack.c.l.b16 %v15
  %v169 = vunpack.c.h.b16 %v15
  %v170 = vunpack.c.l.b16 %v16
  %v171 = vunpack.c.h.b16 %v16
  %v172 = vunpack.c.l.b16 %v17
  %v173 = vunpack.c.h.b16 %v17
  %v174 = vunpack.c.l.b16 %v18
  %v175 = vunpack.c.h.b16 %v18
  %v176 = vunpack.c.l.b16 %v19
  %v177 = vunpack.c.h.b16 %v19
  %v178 = vunpack.c.l.b16 %v20
  %v179 = vunpack.c.h.b16 %v20
  %v180 = vunpack.c.l.b16 %v21
  %v181 = vunpack.c.h.b16 %v21
  %v182 = vunpack.c.l.b16 %v22
  %v183 = vunpack.c.h.b16 %v22
  %v184 = vunpack.c.l.b16 %v23
  %v185 = vunpack.c.h.b16 %v23
  %v186 = vunpack.c.l.b16 %v24
  %v187 = vunpack.c.h.b16 %v24
  %v188 = vunpack.c.l.b16 %v25
  %v189 = vunpack.c.h.b16 %v25
  %v190 = vunpack.c.l.b16 %v26
  %v191 = vunpack.c.h.b16 %v26
  %v192 = vunpack.c.l.b16 %v27
  %v193 = vunpack.c.h.b16 %v27
  %v194 = vunpack.c.l.b16 %v28
  %v195 = vunpack.c.h.b16 %v28
  %v196 = vunpack.c.l.b16 %v29
  %v197 = vunpack.c.h.b16 %v29
  %v198 = vunpack.c.l.b16 %v30
  %v199 = vunpack.c.h.b16 %v30
  %v200 = vunpack.c.l.b16 %v31
  %v201 = vunpack.c.h.b16 %v31
  %v202 = vunpack.c.l.b16 %v32
  %v203 = vunpack.c.h.b16 %v32
  %v204 = vunpack.c.l.b16 %v33
  %v205 = vunpack.c.h.b16 %v33
  %v206 = vunpack.c.l.b16 %v34
  %v207 = vunpack.c.h.b16 %v34
  %v208 = vunpack.c.l.b16 %v35
  %v209 = vunpack.c.h.b16 %v35
  %v210 = vunpack.c.l.b16 %v36
  %v211 = vunpack.c.h.b16 %v36
  %v212 = vunpack.c.l.b16 %v37
  %v213 = vunpack.c.h.b16 %v37
  %v214 = vunpack.c.l.b16 %v38
  %v215 = vunpack.c.h.b16 %v38
  %v216 = vunpack.c.l.b16 %v39
  %v217 = vunpack.c.h.b16 %v39
  %v218 = vunpack.c.l.b16 %v40
  %v219 = vunpack.c.h.b16 %v40
  %v220 = vunpack.c.l.b16 %v41
  %v221 = vunpack.c.h.b16 %v41
  %v222 = vunpack.c.l.b16 %v42
  %v223 = vunpack.c.h.b16 %v42
  %v224 = vunpack.c.l.b16 %v43
  %v225 = vunpack.c.h.b16 %v43
  %v226 = vunpack.c.l.b16 %v44
  %v227 = vunpack.c.h.b16 %v44
  %v228 = vunpack.c.l.b16 %v45
  %v229 = vunpack.c.h.b16 %v45
  %v230 = vunpack.c.l.b16 %v46
  %v231 = vunpack.c.h.b16 %v46
  %v232 = vunpack.c.l.b16 %v47
  %v233 = vunpack.c.h.b16 %v47
  %v234 = vunpack.c.l.b16 %v48
  %v235 = vunpack.c.h.b16 %v48
  %v236 = vunpack.c.l.b16 %v49
  %v237 = vunpack.c.h.b16 %v49
  %v238 = vunpack.c.l.b16 %v50
  %v239 = vunpack.c.h.b16 %v50
  %v240 = vunpack.c.l.b16 %v51
  %v241 = vunpack.c.h.b16 %v51
  %v242 = vunpack.c.l.b16 %v52
  %v243 = vunpack.c.h.b16 %v52
  %v244 = vunpack.c.l.b16 %v53
  %v245 = vunpack.c.h.b16 %v53
  %v246 = vunpack.c.l.b16 %v54
  %v247 = vunpack.c.h.b16 %v54
  %v248 = vunpack.c.l.b16 %v55
  %v249 = vunpack.c.h.b16 %v55
  %v250 = vunpack.c.l.b16 %v56
  %v251 = vunpack.c.h.b16 %v56
  %v252 = vunpack.c.l.b16 %v57
  %v253 = vunpack.c.h.b16 %v57
  %v254 = vunpack.c.l.b16 %v58
  %v255 = vunpack.c.h.b16 %v58
  %v256 = vunpack.c.l.b16 %v59
  %v257 = vunpack.c.h.b16 %v59
  %v258 = vunpack.c.l.b16 %v60
  %v259 = vunpack.c.h.b16 %v60
  %v260 = vunpack.c.l.b16 %v61
  %v261 = vunpack.c.h.b16 %v61
  %v262 = vunpack.c.l.b16 %v62
  %v263 = vunpack.c.h.b16 %v62
  %v264 = vunpack.c.l.b16 %v63
  %v265 = vunpack.c.h.b16 %v63
  %v266 = vunpack.c.l.b16 %v64
  %v267 = vunpack.c.h.b16 %v64
  %v268 = vunpack.c.l.b16 %v65
  %v269 = vunpack.c.h.b16 %v65
  %v270 = vunpack.c.l.b16 %v66
  %v271 = vunpack.c.h.b16 %v66
  %v272 = vunpack.c.l.b16 %v67
  %v273 = vunpack.c.h.b16 %v67
  %v274 = vunpack.c.l.b16 %v68
  %v275 = vunpack.c.h.b16 %v68
  %v276 = vunpack.c.l.b16 %v69
  %v277 = vunpack.c.h.b16 %v69
  %v278 = vunpack.c.l.b16 %v70
  %v279 = vunpack.c.h.b16 %v70
  %v280 = vunpack.c.l.b16 %v71
  %v281 = vunpack.c.h.b16 %v71
  %v282 = vunpack.c.l.b16 %v72
  %v283 = vunpack.c.h.b16 %v72
  %v284 = vunpack.c.l.b16 %v73
  %v285 = vunpack.c.h.b16 %v73
  %v286 = vunpack.c.l.b16 %v74
  %v287 = vunpack.c.h.b16 %v74
  %v288 = vunpack.c.l.b16 %v75
  %v289 = vunpack.c.h.b16 %v75
  %v290 = vunpack.c.l.b16 %v76
  %v291 = vunpack.c.h.b16 %v76
  %v292 = vunpack.c.l.b16 %v77
  %v293 = vunpack.c.h.b16 %v77
  %v294 = vunpack.c.l.b16 %v78
  %v295 = vunpack.c.h.b16 %v78
  %v296 = vpack.c.b16 %v170, %v168
  %v297 = vpack.c.b16 %v171, %v169
  %v298 = vpack.c.b16 %v174, %v172
  %v299 = vpack.c.b16 %v175, %v173
  %v300 = vpack.c.b16 %v178, %v176
  %v301 = vpack.c.b16 %v179, %v177
  %v302 = vpack.c.b16 %v182, %v180
  %v303 = vpack.c.b16 %v183, %v181
  %v304 = vpack.c.b16 %v186, %v184
  %v305 = vpack.c.b16 %v187, %v185
  %v306 = vpack.c.b16 %v190, %v188
  %v307 = vpack.c.b16 %v191, %v189
  %v308 = vpack.c.b16 %v194, %v192
  %v309 = vpack.c.b16 %v195, %v193
  %v310 = vpack.c.b16 %v198, %v196
  %v311 = vpack.c.b16 %v199, %v197
  %v312 = vpack.c.b16 %v202, %v200
  %v313 = vpack.c.b16 %v203, %v201
  %v314 = vpack.c.b16 %v206, %v204
  %v315 = vpack.c.b16 %v207, %v205
  %v316 = vpack.c.b16 %v210, %v208
  %v317 = vpack.c.b16 %v211, %v209
  %v318 = vpack.c.b16 %v214, %v212
  %v319 = vpack.c.b16 %v215, %v213
  %v320 = vpack.c.b16 %v218, %v216
  %v321 = vpack.c.b16 %v219, %v217
  %v322 = vpack.c.b16 %v222, %v220
  %v323 = vpack.c.b16 %v223, %v221
  %v324 = vpack.c.b16 %v226, %v224
  %v325 = vpack.c.b16 %v227, %v225
  %v326 = vpack.c.b16 %v230, %v228
  %v327 = vpack.c.b16 %v231, %v229
  %v328 = vpack.c.b16 %v234, %v232
  %v329 = vpack.c.b16 %v235, %v233
  %v330 = vpack.c.b16 %v238, %v236
  %v331 = vpack.c.b16 %v239, %v237
  %v332 = vpack.c.b16 %v242, %v240
  %v333 = vpack.c.b16 %v243, %v241
  %v334 = vpack.c.b16 %v246, %v244
  %v335 = vpack.c.b16 %v247, %v245
  %v336 = vpack.c.b16 %v250, %v248
  %v337 = vpack.c.b16 %v251, %v249
  %v338 = vpack.c.b16 %v254, %v252
  %v339 = vpack.c.b16 %v255, %v253
  %v340 = vpack.c.b16 %v258, %v256
  %v341 = vpack.c.b16 %v259, %v257
  %v342 = vpack.c.b16 %v262, %v260
  %v343 = vpack.c.b16 %v263, %v261
  %v344 = vpack.c.b16 %v266, %v264
  %v345 = vpack.c.b16 %v267, %v265
  %v346 = vpack.c.b16 %v270, %v268
  %v347 = vpack.c.b16 %v271, %v269
  %v348 = vpack.c.b16 %v274, %v272
  %v349 = vpack.c.b16 %v275, %v273
  %v350 = vpack.c.b16 %v278, %v276
  %v351 = vpack.c.b16 %v279, %v277
  %v352 = vpack.c.b16 %v282, %v280
  %v353 = vpack.c.b16 %v283, %v281
  %v354 = vpack.c.b16 %v286, %v284
  %v355 = vpack.c.b16 %v287, %v285
  %v356 = vpack.c.b16 %v290, %v288
  %v357 = vpack.c.b16 %v291, %v289
  %v358 = vpack.c.b16 %v294, %v292
  %v359 = vpack.c.b16 %v295, %v293
  %v410 = vunpack.c.l.b16 %v79
  %v411 = vunpack.c.l.b16 %v80
  %v412 = vunpack.c.l.b16 %v81
  %v413 = vunpack.c.l.b16 %v82
  %v414 = vunpack.c.l.b16 %v83
  %v415 = vunpack.c.l.b16 %v84
  %v416 = vunpack.c.l.b16 %v85
  %v417 = vunpack.c.l.b16 %v86
  %v418 = vunpack.c.l.b16 %v87
  %v419 = vunpack.c.l.b16 %v88
  %v420 = vunpack.c.l.b16 %v89
  %v421 = vunpack.c.l.b16 %v90
  %v422 = vunpack.c.l.b16 %v91
  %v423 = vunpack.c.l.b16 %v92
  %v424 = vunpack.c.l.b16 %v93
  %v425 = vunpack.c.l.b16 %v94
  %v426 = vunpack.c.l.b16 %v95
  %v427 = vunpack.c.l.b16 %v96
  %v428 = vpack.c.b16 %v411, %v410
  %v429 = vpack.c.b16 %v413, %v412
  %v430 = vpack.c.b16 %v415, %v414
  %v431 = vpack.c.b16 %v417, %v416
  %v432 = vpack.c.b16 %v419, %v418
  %v433 = vpack.c.b16 %v421, %v420
  %v434 = vpack.c.b16 %v423, %v422
  %v435 = vpack.c.b16 %v425, %v424
  %v436 = vpack.c.b16 %v427, %v426
  %vm446 = vcmask 130048
  %v448 = vsel %vm446, %v297, 0
  %v451 = vsel %vm446, %v299, 0
  %v454 = vsel %vm446, %v301, 0
  %v457 = vsel %vm446, %v303, 0
  %v460 = vsel %vm446, %v305, 0
  %v463 = vsel %vm446, %v307, 0
  %v466 = vsel %vm446, %v309, 0
  %v469 = vsel %vm446, %v311, 0
  %v472 = vsel %vm446, %v313, 0
  %v475 = vsel %vm446, %v315, 0
  %v478 = vsel %vm446, %v317, 0
  %v481 = vsel %vm446, %v319, 0
  %v484 = vsel %vm446, %v321, 0
  %v487 = vsel %vm446, %v323, 0
  %v490 = vsel %vm446, %v325, 0
  %v493 = vsel %vm446, %v327, 0
  %v496 = vsel %vm446, %v329, 0
  %v499 = vsel %vm446, %v331, 0
  %v502 = vsel %vm446, %v333, 0
  %v505 = vsel %vm446, %v335, 0
  %v508 = vsel %vm446, %v337, 0
  %v511 = vsel %vm446, %v339, 0
  %v514 = vsel %vm446, %v341, 0
  %v517 = vsel %vm446, %v343, 0
  %v520 = vsel %vm446, %v345, 0
  %v523 = vsel %vm446, %v347, 0
  %v526 = vsel %vm446, %v349, 0
  %v529 = vsel %vm446, %v351, 0
  %v532 = vsel %vm446, %v353, 0
  %v535 = vsel %vm446, %v355, 0
  %v538 = vsel %vm446, %v357, 0
  %v541 = vsel %vm446, %v359, 0
  %543 = vmatprep.subr.bf16.mxu0 0
  %544 = vmatpush1.bf16.msra.mxu0 %v428
  %545 = vmatprep.subr.bf16.mxu0 0
  %546 = vmatpush1.bf16.msra.mxu0 %v429
  %547 = vmatprep.subr.bf16.mxu0 0
  %548 = vmatpush1.bf16.msra.mxu0 %v430
  %549 = vmatprep.subr.bf16.mxu0 0
  %550 = vmatpush1.bf16.msra.mxu0 %v431
  %551 = vmatprep.subr.bf16.mxu0 0
  %552 = vmatpush1.bf16.msra.mxu0 %v432
  %553 = vmatprep.subr.bf16.mxu0 0
  %554 = vmatpush1.bf16.msra.mxu0 %v433
  %555 = vmatprep.subr.bf16.mxu0 0
  %556 = vmatpush1.bf16.msra.mxu0 %v434
  %557 = vmatprep.subr.bf16.mxu0 0
  %558 = vmatpush1.bf16.msra.mxu0 %v435
  %559 = vmatprep.subr.bf16.mxu0 0
  %560 = vmatpush1.bf16.msra.mxu0 %v436
  %561 = vmatprep.subr.bf16.mxu0 0
  %562 = vmatpush1.bf16.msra.mxu0 0
  %563 = vmatprep.subr.bf16.mxu0 0
  %564 = vmatpush1.bf16.msra.mxu0 0
  %565 = vmatprep.subr.bf16.mxu0 0
  %566 = vmatpush1.bf16.msra.mxu0 0
  %567 = vmatprep.subr.bf16.mxu0 0
  %568 = vmatpush1.bf16.msra.mxu0 0
  %569 = vmatprep.subr.bf16.mxu0 0
  %570 = vmatpush1.bf16.msra.mxu0 0
  %571 = vmatprep.subr.bf16.mxu0 0
  %572 = vmatpush1.bf16.msra.mxu0 0
  %573 = vmatprep.subr.bf16.mxu0 0
  %574 = vmatpush1.bf16.msra.mxu0 0
  %575 = vmatprep.mubr.bf16.mxu0 %v448
  %576 = vmatmul.mubr.bf16.gmra.mrb[0].mxu0 %v296
  %v577 = vpop.f32.mrb[0].mxu0
  %v578 = vadd.f32 %v102, %v577
  %v579 = vpop.f32.mrb[0].mxu0
  %v580 = vpop.f32.mrb[0].mxu0
  %v581 = vadd.f32 %v102, %v580
  %v582 = vpop.f32.mrb[0].mxu0
  %583 = vmatprep.mubr.bf16.mxu0 %v451
  %584 = vmatmul.mubr.bf16.gmra.mrb[0].mxu0 %v298
  %v585 = vpop.f32.mrb[0].mxu0
  %v586 = vadd.f32 %v102, %v585
  %v587 = vpop.f32.mrb[0].mxu0
  %v588 = vpop.f32.mrb[0].mxu0
  %v589 = vadd.f32 %v102, %v588
  %v590 = vpop.f32.mrb[0].mxu0
  %591 = vmatprep.mubr.bf16.mxu0 %v454
  %592 = vmatmul.mubr.bf16.gmra.mrb[0].mxu0 %v300
  %v593 = vpop.f32.mrb[0].mxu0
  %v594 = vadd.f32 %v102, %v593
  %v595 = vpop.f32.mrb[0].mxu0
  %v596 = vpop.f32.mrb[0].mxu0
  %v597 = vadd.f32 %v102, %v596
  %v598 = vpop.f32.mrb[0].mxu0
  %599 = vmatprep.mubr.bf16.mxu0 %v457
  %600 = vmatmul.mubr.bf16.gmra.mrb[0].mxu0 %v302
  %v601 = vpop.f32.mrb[0].mxu0
  %v602 = vadd.f32 %v102, %v601
  %v603 = vpop.f32.mrb[0].mxu0
  %v604 = vpop.f32.mrb[0].mxu0
  %v605 = vadd.f32 %v102, %v604
  %v606 = vpop.f32.mrb[0].mxu0
  %607 = vmatprep.mubr.bf16.mxu0 %v460
  %608 = vmatmul.mubr.bf16.gmra.mrb[0].mxu0 %v304
  %v609 = vpop.f32.mrb[0].mxu0
  %v610 = vadd.f32 %v102, %v609
  %v611 = vpop.f32.mrb[0].mxu0
  %v612 = vpop.f32.mrb[0].mxu0
  %v613 = vadd.f32 %v102, %v612
  %v614 = vpop.f32.mrb[0].mxu0
  %615 = vmatprep.mubr.bf16.mxu0 %v463
  %616 = vmatmul.mubr.bf16.gmra.mrb[0].mxu0 %v306
  %v617 = vpop.f32.mrb[0].mxu0
  %v618 = vadd.f32 %v102, %v617
  %v619 = vpop.f32.mrb[0].mxu0
  %v620 = vpop.f32.mrb[0].mxu0
  %v621 = vadd.f32 %v102, %v620
  %v622 = vpop.f32.mrb[0].mxu0
  %623 = vmatprep.mubr.bf16.mxu0 %v466
  %624 = vmatmul.mubr.bf16.gmra.mrb[0].mxu0 %v308
  %v625 = vpop.f32.mrb[0].mxu0
  %v626 = vadd.f32 %v102, %v625
  %v627 = vpop.f32.mrb[0].mxu0
  %v628 = vpop.f32.mrb[0].mxu0
  %v629 = vadd.f32 %v102, %v628
  %v630 = vpop.f32.mrb[0].mxu0
  %631 = vmatprep.mubr.bf16.mxu0 %v469
  %632 = vmatmul.mubr.bf16.gmra.mrb[0].mxu0 %v310
  %v633 = vpop.f32.mrb[0].mxu0
  %v634 = vadd.f32 %v102, %v633
  %v635 = vpop.f32.mrb[0].mxu0
  %v636 = vpop.f32.mrb[0].mxu0
  %v637 = vadd.f32 %v102, %v636
  %v638 = vpop.f32.mrb[0].mxu0
  %639 = vmatprep.mubr.bf16.mxu0 %v472
  %640 = vmatmul.mubr.bf16.gmra.mrb[0].mxu0 %v312
  %v641 = vpop.f32.mrb[0].mxu0
  %v642 = vadd.f32 %v102, %v641
  %v643 = vpop.f32.mrb[0].mxu0
  %v644 = vpop.f32.mrb[0].mxu0
  %v645 = vadd.f32 %v102, %v644
  %v646 = vpop.f32.mrb[0].mxu0
  %647 = vmatprep.mubr.bf16.mxu0 %v475
  %648 = vmatmul.mubr.bf16.gmra.mrb[0].mxu0 %v314
  %v649 = vpop.f32.mrb[0].mxu0
  %v650 = vadd.f32 %v102, %v649
  %v651 = vpop.f32.mrb[0].mxu0
  %v652 = vpop.f32.mrb[0].mxu0
  %v653 = vadd.f32 %v102, %v652
  %v654 = vpop.f32.mrb[0].mxu0
  %655 = vmatprep.mubr.bf16.mxu0 %v478
  %656 = vmatmul.mubr.bf16.gmra.mrb[0].mxu0 %v316
  %v657 = vpop.f32.mrb[0].mxu0
  %v658 = vadd.f32 %v102, %v657
  %v659 = vpop.f32.mrb[0].mxu0
  %v660 = vpop.f32.mrb[0].mxu0
  %v661 = vadd.f32 %v102, %v660
  %v662 = vpop.f32.mrb[0].mxu0
  %663 = vmatprep.mubr.bf16.mxu0 %v481
  %664 = vmatmul.mubr.bf16.gmra.mrb[0].mxu0 %v318
  %v665 = vpop.f32.mrb[0].mxu0
  %v666 = vadd.f32 %v102, %v665
  %v667 = vpop.f32.mrb[0].mxu0
  %v668 = vpop.f32.mrb[0].mxu0
  %v669 = vadd.f32 %v102, %v668
  %v670 = vpop.f32.mrb[0].mxu0
  %671 = vmatprep.mubr.bf16.mxu0 %v484
  %672 = vmatmul.mubr.bf16.gmra.mrb[0].mxu0 %v320
  %v673 = vpop.f32.mrb[0].mxu0
  %v674 = vadd.f32 %v102, %v673
  %v675 = vpop.f32.mrb[0].mxu0
  %v676 = vpop.f32.mrb[0].mxu0
  %v677 = vadd.f32 %v102, %v676
  %v678 = vpop.f32.mrb[0].mxu0
  %679 = vmatprep.mubr.bf16.mxu0 %v487
  %680 = vmatmul.mubr.bf16.gmra.mrb[0].mxu0 %v322
  %v681 = vpop.f32.mrb[0].mxu0
  %v682 = vadd.f32 %v102, %v681
  %v683 = vpop.f32.mrb[0].mxu0
  %v684 = vpop.f32.mrb[0].mxu0
  %v685 = vadd.f32 %v102, %v684
  %v686 = vpop.f32.mrb[0].mxu0
  %687 = vmatprep.mubr.bf16.mxu0 %v490
  %688 = vmatmul.mubr.bf16.gmra.mrb[0].mxu0 %v324
  %v689 = vpop.f32.mrb[0].mxu0
  %v690 = vadd.f32 %v102, %v689
  %v691 = vpop.f32.mrb[0].mxu0
  %v692 = vpop.f32.mrb[0].mxu0
  %v693 = vadd.f32 %v102, %v692
  %v694 = vpop.f32.mrb[0].mxu0
  %695 = vmatprep.mubr.bf16.mxu0 %v493
  %696 = vmatmul.mubr.bf16.gmra.mrb[0].mxu0 %v326
  %v697 = vpop.f32.mrb[0].mxu0
  %v698 = vadd.f32 %v102, %v697
  %v699 = vpop.f32.mrb[0].mxu0
  %v700 = vpop.f32.mrb[0].mxu0
  %v701 = vadd.f32 %v102, %v700
  %v702 = vpop.f32.mrb[0].mxu0
  %703 = vmatprep.mubr.bf16.mxu0 %v496
  %704 = vmatmul.mubr.bf16.gmra.mrb[0].mxu0 %v328
  %v705 = vpop.f32.mrb[0].mxu0
  %v706 = vadd.f32 %v102, %v705
  %v707 = vpop.f32.mrb[0].mxu0
  %v708 = vpop.f32.mrb[0].mxu0
  %v709 = vadd.f32 %v102, %v708
  %v710 = vpop.f32.mrb[0].mxu0
  %711 = vmatprep.mubr.bf16.mxu0 %v499
  %712 = vmatmul.mubr.bf16.gmra.mrb[0].mxu0 %v330
  %v713 = vpop.f32.mrb[0].mxu0
  %v714 = vadd.f32 %v102, %v713
  %v715 = vpop.f32.mrb[0].mxu0
  %v716 = vpop.f32.mrb[0].mxu0
  %v717 = vadd.f32 %v102, %v716
  %v718 = vpop.f32.mrb[0].mxu0
  %719 = vmatprep.mubr.bf16.mxu0 %v502
  %720 = vmatmul.mubr.bf16.gmra.mrb[0].mxu0 %v332
  %v721 = vpop.f32.mrb[0].mxu0
  %v722 = vadd.f32 %v102, %v721
  %v723 = vpop.f32.mrb[0].mxu0
  %v724 = vpop.f32.mrb[0].mxu0
  %v725 = vadd.f32 %v102, %v724
  %v726 = vpop.f32.mrb[0].mxu0
  %727 = vmatprep.mubr.bf16.mxu0 %v505
  %728 = vmatmul.mubr.bf16.gmra.mrb[0].mxu0 %v334
  %v729 = vpop.f32.mrb[0].mxu0
  %v730 = vadd.f32 %v102, %v729
  %v731 = vpop.f32.mrb[0].mxu0
  %v732 = vpop.f32.mrb[0].mxu0
  %v733 = vadd.f32 %v102, %v732
  %v734 = vpop.f32.mrb[0].mxu0
  %735 = vmatprep.mubr.bf16.mxu0 %v508
  %736 = vmatmul.mubr.bf16.gmra.mrb[0].mxu0 %v336
  %v737 = vpop.f32.mrb[0].mxu0
  %v738 = vadd.f32 %v102, %v737
  %v739 = vpop.f32.mrb[0].mxu0
  %v740 = vpop.f32.mrb[0].mxu0
  %v741 = vadd.f32 %v102, %v740
  %v742 = vpop.f32.mrb[0].mxu0
  %743 = vmatprep.mubr.bf16.mxu0 %v511
  %744 = vmatmul.mubr.bf16.gmra.mrb[0].mxu0 %v338
  %v745 = vpop.f32.mrb[0].mxu0
  %v746 = vadd.f32 %v102, %v745
  %v747 = vpop.f32.mrb[0].mxu0
  %v748 = vpop.f32.mrb[0].mxu0
  %v749 = vadd.f32 %v102, %v748
  %v750 = vpop.f32.mrb[0].mxu0
  %751 = vmatprep.mubr.bf16.mxu0 %v514
  %752 = vmatmul.mubr.bf16.gmra.mrb[0].mxu0 %v340
  %v753 = vpop.f32.mrb[0].mxu0
  %v754 = vadd.f32 %v102, %v753
  %v755 = vpop.f32.mrb[0].mxu0
  %v756 = vpop.f32.mrb[0].mxu0
  %v757 = vadd.f32 %v102, %v756
  %v758 = vpop.f32.mrb[0].mxu0
  %759 = vmatprep.mubr.bf16.mxu0 %v517
  %760 = vmatmul.mubr.bf16.gmra.mrb[0].mxu0 %v342
  %v761 = vpop.f32.mrb[0].mxu0
  %v762 = vadd.f32 %v102, %v761
  %v763 = vpop.f32.mrb[0].mxu0
  %v764 = vpop.f32.mrb[0].mxu0
  %v765 = vadd.f32 %v102, %v764
  %v766 = vpop.f32.mrb[0].mxu0
  %767 = vmatprep.mubr.bf16.mxu0 %v520
  %768 = vmatmul.mubr.bf16.gmra.mrb[0].mxu0 %v344
  %v769 = vpop.f32.mrb[0].mxu0
  %v770 = vadd.f32 %v102, %v769
  %v771 = vpop.f32.mrb[0].mxu0
  %v772 = vpop.f32.mrb[0].mxu0
  %v773 = vadd.f32 %v102, %v772
  %v774 = vpop.f32.mrb[0].mxu0
  %775 = vmatprep.mubr.bf16.mxu0 %v523
  %776 = vmatmul.mubr.bf16.gmra.mrb[0].mxu0 %v346
  %v777 = vpop.f32.mrb[0].mxu0
  %v778 = vadd.f32 %v102, %v777
  %v779 = vpop.f32.mrb[0].mxu0
  %v780 = vpop.f32.mrb[0].mxu0
  %v781 = vadd.f32 %v102, %v780
  %v782 = vpop.f32.mrb[0].mxu0
  %783 = vmatprep.mubr.bf16.mxu0 %v526
  %784 = vmatmul.mubr.bf16.gmra.mrb[0].mxu0 %v348
  %v785 = vpop.f32.mrb[0].mxu0
  %v786 = vadd.f32 %v102, %v785
  %v787 = vpop.f32.mrb[0].mxu0
  %v788 = vpop.f32.mrb[0].mxu0
  %v789 = vadd.f32 %v102, %v788
  %v790 = vpop.f32.mrb[0].mxu0
  %791 = vmatprep.mubr.bf16.mxu0 %v529
  %792 = vmatmul.mubr.bf16.gmra.mrb[0].mxu0 %v350
  %v793 = vpop.f32.mrb[0].mxu0
  %v794 = vadd.f32 %v102, %v793
  %v795 = vpop.f32.mrb[0].mxu0
  %v796 = vpop.f32.mrb[0].mxu0
  %v797 = vadd.f32 %v102, %v796
  %v798 = vpop.f32.mrb[0].mxu0
  %799 = vmatprep.mubr.bf16.mxu0 %v532
  %800 = vmatmul.mubr.bf16.gmra.mrb[0].mxu0 %v352
  %v801 = vpop.f32.mrb[0].mxu0
  %v802 = vadd.f32 %v102, %v801
  %v803 = vpop.f32.mrb[0].mxu0
  %v804 = vpop.f32.mrb[0].mxu0
  %v805 = vadd.f32 %v102, %v804
  %v806 = vpop.f32.mrb[0].mxu0
  %807 = vmatprep.mubr.bf16.mxu0 %v535
  %808 = vmatmul.mubr.bf16.gmra.mrb[0].mxu0 %v354
  %v809 = vpop.f32.mrb[0].mxu0
  %v810 = vadd.f32 %v102, %v809
  %v811 = vpop.f32.mrb[0].mxu0
  %v812 = vpop.f32.mrb[0].mxu0
  %v813 = vadd.f32 %v102, %v812
  %v814 = vpop.f32.mrb[0].mxu0
  %815 = vmatprep.mubr.bf16.mxu0 %v538
  %816 = vmatmul.mubr.bf16.gmra.mrb[0].mxu0 %v356
  %v817 = vpop.f32.mrb[0].mxu0
  %v818 = vadd.f32 %v102, %v817
  %v819 = vpop.f32.mrb[0].mxu0
  %v820 = vpop.f32.mrb[0].mxu0
  %v821 = vadd.f32 %v102, %v820
  %v822 = vpop.f32.mrb[0].mxu0
  %823 = vmatprep.mubr.bf16.mxu0 %v541
  %824 = vmatmul.mubr.bf16.gmra.mrb[0].mxu0 %v358
  %v825 = vpop.f32.mrb[0].mxu0
  %v826 = vadd.f32 %v102, %v825
  %v827 = vpop.f32.mrb[0].mxu0
  %v828 = vpop.f32.mrb[0].mxu0
  %v829 = vadd.f32 %v102, %v828
  %v830 = vpop.f32.mrb[0].mxu0
  %831 = vdwg.mxu0
  %vm832 = vcmask 261120
  %833 = vst.msk [vmem:[%s3] sm:$0xff] %vm832, %v578
  %834 = vst.msk [vmem:[%s3 + $0x8] sm:$0xff] %vm832, %v581
  %835 = vst.msk [vmem:[%s3 + $0x10] sm:$0xff] %vm832, %v586
  %836 = vst.msk [vmem:[%s3 + $0x18] sm:$0xff] %vm832, %v589
  %837 = vst.msk [vmem:[%s3 + $0x20] sm:$0xff] %vm832, %v594
  %838 = vst.msk [vmem:[%s3 + $0x28] sm:$0xff] %vm832, %v597
  %839 = vst.msk [vmem:[%s3 + $0x30] sm:$0xff] %vm832, %v602
  %840 = vst.msk [vmem:[%s3 + $0x38] sm:$0xff] %vm832, %v605
  %841 = vst.msk [vmem:[%s3 + $0x40] sm:$0xff] %vm832, %v610
  %842 = vst.msk [vmem:[%s3 + $0x48] sm:$0xff] %vm832, %v613
  %843 = vst.msk [vmem:[%s3 + $0x50] sm:$0xff] %vm832, %v618
  %844 = vst.msk [vmem:[%s3 + $0x58] sm:$0xff] %vm832, %v621
  %845 = vst.msk [vmem:[%s3 + $0x60] sm:$0xff] %vm832, %v626
  %846 = vst.msk [vmem:[%s3 + $0x68] sm:$0xff] %vm832, %v629
  %847 = vst.msk [vmem:[%s3 + $0x70] sm:$0xff] %vm832, %v634
  %848 = vst.msk [vmem:[%s3 + $0x78] sm:$0xff] %vm832, %v637
  %849 = vst.msk [vmem:[%s3 + $0x80] sm:$0xff] %vm832, %v642
  %850 = vst.msk [vmem:[%s3 + $0x88] sm:$0xff] %vm832, %v645
  %851 = vst.msk [vmem:[%s3 + $0x90] sm:$0xff] %vm832, %v650
  %852 = vst.msk [vmem:[%s3 + $0x98] sm:$0xff] %vm832, %v653
  %853 = vst.msk [vmem:[%s3 + $0xa0] sm:$0xff] %vm832, %v658
  %854 = vst.msk [vmem:[%s3 + $0xa8] sm:$0xff] %vm832, %v661
  %855 = vst.msk [vmem:[%s3 + $0xb0] sm:$0xff] %vm832, %v666
  %856 = vst.msk [vmem:[%s3 + $0xb8] sm:$0xff] %vm832, %v669
  %857 = vst.msk [vmem:[%s3 + $0xc0] sm:$0xff] %vm832, %v674
  %858 = vst.msk [vmem:[%s3 + $0xc8] sm:$0xff] %vm832, %v677
  %859 = vst.msk [vmem:[%s3 + $0xd0] sm:$0xff] %vm832, %v682
  %860 = vst.msk [vmem:[%s3 + $0xd8] sm:$0xff] %vm832, %v685
  %861 = vst.msk [vmem:[%s3 + $0xe0] sm:$0xff] %vm832, %v690
  %862 = vst.msk [vmem:[%s3 + $0xe8] sm:$0xff] %vm832, %v693
  %863 = vst.msk [vmem:[%s3 + $0xf0] sm:$0xff] %vm832, %v698
  %864 = vst.msk [vmem:[%s3 + $0xf8] sm:$0xff] %vm832, %v701
  %865 = vst.msk [vmem:[%s3 + $0x100] sm:$0xff] %vm832, %v706
  %866 = vst.msk [vmem:[%s3 + $0x108] sm:$0xff] %vm832, %v709
  %867 = vst.msk [vmem:[%s3 + $0x110] sm:$0xff] %vm832, %v714
  %868 = vst.msk [vmem:[%s3 + $0x118] sm:$0xff] %vm832, %v717
  %869 = vst.msk [vmem:[%s3 + $0x120] sm:$0xff] %vm832, %v722
  %870 = vst.msk [vmem:[%s3 + $0x128] sm:$0xff] %vm832, %v725
  %871 = vst.msk [vmem:[%s3 + $0x130] sm:$0xff] %vm832, %v730
  %872 = vst.msk [vmem:[%s3 + $0x138] sm:$0xff] %vm832, %v733
  %873 = vst.msk [vmem:[%s3 + $0x140] sm:$0xff] %vm832, %v738
  %874 = vst.msk [vmem:[%s3 + $0x148] sm:$0xff] %vm832, %v741
  %875 = vst.msk [vmem:[%s3 + $0x150] sm:$0xff] %vm832, %v746
  %876 = vst.msk [vmem:[%s3 + $0x158] sm:$0xff] %vm832, %v749
  %877 = vst.msk [vmem:[%s3 + $0x160] sm:$0xff] %vm832, %v754
  %878 = vst.msk [vmem:[%s3 + $0x168] sm:$0xff] %vm832, %v757
  %879 = vst.msk [vmem:[%s3 + $0x170] sm:$0xff] %vm832, %v762
  %880 = vst.msk [vmem:[%s3 + $0x178] sm:$0xff] %vm832, %v765
  %881 = vst.msk [vmem:[%s3 + $0x180] sm:$0xff] %vm832, %v770
  %882 = vst.msk [vmem:[%s3 + $0x188] sm:$0xff] %vm832, %v773
  %883 = vst.msk [vmem:[%s3 + $0x190] sm:$0xff] %vm832, %v778
  %884 = vst.msk [vmem:[%s3 + $0x198] sm:$0xff] %vm832, %v781
  %885 = vst.msk [vmem:[%s3 + $0x1a0] sm:$0xff] %vm832, %v786
  %886 = vst.msk [vmem:[%s3 + $0x1a8] sm:$0xff] %vm832, %v789
  %887 = vst.msk [vmem:[%s3 + $0x1b0] sm:$0xff] %vm832, %v794
  %888 = vst.msk [vmem:[%s3 + $0x1b8] sm:$0xff] %vm832, %v797
  %889 = vst.msk [vmem:[%s3 + $0x1c0] sm:$0xff] %vm832, %v802
  %890 = vst.msk [vmem:[%s3 + $0x1c8] sm:$0xff] %vm832, %v805
  %891 = vst.msk [vmem:[%s3 + $0x1d0] sm:$0xff] %vm832, %v810
  %892 = vst.msk [vmem:[%s3 + $0x1d8] sm:$0xff] %vm832, %v813
  %893 = vst.msk [vmem:[%s3 + $0x1e0] sm:$0xff] %vm832, %v818
  %894 = vst.msk [vmem:[%s3 + $0x1e8] sm:$0xff] %vm832, %v821
  %895 = vst.msk [vmem:[%s3 + $0x1f0] sm:$0xff] %vm832, %v826
  %896 = vst.msk [vmem:[%s3 + $0x1f8] sm:$0xff] %vm832, %v829
  // Predicated region
  $region14: #{tpu_custom_call.1} parent=0 // pred_check
    _
  $region15: #{tpu_custom_call.1} parent=0 // pred_check_branch
    %898 = sbr.rel (0) target = $region17
  $region16: #{tpu_custom_call.1} parent=0 // pred_region
    _
  $region17: #{tpu_custom_call.1} parent=0 // pred_fallthru
    _
  // Predicated region
  $region18: #{tpu_custom_call.1} parent=0 // pred_check
    _
  $region19: #{tpu_custom_call.1} parent=0 // pred_check_branch
    %900 = sbr.rel (0) target = $region21
  $region20: #{tpu_custom_call.1} parent=0 // pred_region
    _
  $region21: #{tpu_custom_call.1} parent=0 // pred_fallthru
    _

</llo_original>
